<compile_context>
chip_gen: v5e
topology: v5e:2x2
jax: 0.10.0
libtpu: 0.0.40
codegen_flags: <defaults>
</compile_context>

<pallas_src>
import functools

import jax
import jax.numpy as jnp
from jax.experimental import pallas as pl
from jax.experimental.pallas import tpu as pltpu


# ---------------------------------------------------------------------------
# Pallas kernel: matmul (im2col conv, bf16 -> f32 acc) + bias + hardswish
# ---------------------------------------------------------------------------
def _conv_bn_hswish_kernel(x_ref, w_ref, bias_ref, o_ref):
    # x_ref   : (TM, K)       bf16 im2col patch rows
    # w_ref   : (K, CoutP)    bf16 conv weight with BN scale folded in
    # bias_ref: (1, CoutP)    f32 fused (conv bias + BN shift)
    # o_ref   : (TM, CoutP)   f32 output tile (CoutP is a multiple of 128)
    acc = jnp.dot(x_ref[...], w_ref[...], preferred_element_type=jnp.float32)
    y = acc + bias_ref[...]
    # hardswish: x * clamp(x + 3, 0, 6) / 6
    y = y * jnp.clip(y + 3.0, 0.0, 6.0) * (1.0 / 6.0)
    o_ref[...] = y.astype(o_ref.dtype)


# ---------------------------------------------------------------------------
# Layout glue (pure JAX, fused by XLA)
# ---------------------------------------------------------------------------
def _im2col_nhwc(x_nhwc, kh, kw, stride, padding):
    """Extract conv patches. Returns (N, OH, OW, KH*KW*Cin) with (kh, kw, cin)
    fastest-varying order matching the weight reshape below."""
    n, h, w, cin = x_nhwc.shape
    xp = jnp.pad(x_nhwc, ((0, 0), (padding, padding), (padding, padding), (0, 0)))
    oh = (h + 2 * padding - kh) // stride + 1
    ow = (w + 2 * padding - kw) // stride + 1
    cols = []
    for i in range(kh):
        for j in range(kw):
            patch = xp[:, i:i + stride * oh:stride, j:j + stride * ow:stride, :]
            cols.append(patch)
    return jnp.concatenate(cols, axis=-1), oh, ow


def _round_up(v, m):
    return (v + m - 1) // m * m


def _pick_tm(m, bytes_per_row, max_tm=512, tile_budget_bytes=8 * 1024 * 1024):
    """M-tile: as large as possible (amortize per-step overhead), capped so the
    double-buffered x tile fits a conservative VMEM budget (v7x has 64 MiB/TC),
    and keeping >= 2 grid steps when possible so v7x's 2nd TC stays busy."""
    cap = max(128, (tile_budget_bytes // max(1, bytes_per_row)) // 128 * 128)
    tm = min(max_tm, cap)
    while tm > 128 and -(-m // tm) < 2:   # cdiv(m, tm) < 2
        tm //= 2
    return max(tm, 128)


@functools.partial(jax.jit, static_argnames=("stride", "padding"))
def conv_bn_layer(x_nchw, conv_w, conv_b, bn_gamma, bn_beta, bn_mean, bn_var,
                  *, stride=1, padding=1, eps=1e-5):
    """ConvBNLayer forward (groups=1, if_act=True, act='hardswish')."""
    n, cin, h, w = x_nchw.shape
    cout, _, kh, kw = conv_w.shape

    # NCHW -> NHWC, cast to bf16 so the im2col matrix lives in HBM at half width
    # (the kernel is HBM-bound on this stream).
    x_nhwc = jnp.transpose(x_nchw, (0, 2, 3, 1)).astype(jnp.bfloat16)
    patches, oh, ow = _im2col_nhwc(x_nhwc, kh, kw, stride, padding)
    m = n * oh * ow
    k = kh * kw * cin
    x_col = patches.reshape(m, k)                                    # bf16

    # Fold BN (inference) into the weights / bias in f32, then cast to bf16.
    inv_std = 1.0 / jnp.sqrt(bn_var.astype(jnp.float32) + eps)
    scale = bn_gamma.astype(jnp.float32) * inv_std                   # (Cout,)
    bias = (conv_b.astype(jnp.float32) - bn_mean.astype(jnp.float32)) * scale \
        + bn_beta.astype(jnp.float32)                                # (Cout,)

    # PyTorch weight (Cout, Cin, KH, KW) -> (KH, KW, Cin, Cout) -> (K, Cout),
    # BN scale folded into the columns.
    w_col = jnp.transpose(conv_w.astype(jnp.float32), (2, 3, 1, 0)).reshape(k, cout)
    w_col = (w_col * scale[None, :]).astype(jnp.bfloat16)

    # Pad Cout to a multiple of 128: lane-dense stores, full MXU output columns.
    cout_p = _round_up(cout, 128)
    if cout_p != cout:
        w_col = jnp.pad(w_col, ((0, 0), (0, cout_p - cout)))
        bias = jnp.pad(bias, (0, cout_p - cout))
    bias2d = bias.reshape(1, cout_p)

    # Pick the M tile and zero-pad M to a tile multiple (no divisibility assert).
    tm = _pick_tm(m, k * 2)
    m_pad = _round_up(m, tm)
    if m_pad != m:
        x_col = jnp.pad(x_col, ((0, m_pad - m), (0, 0)))
    grid = (m_pad // tm,)

    # Explicit VMEM budget: double-buffered x/out tiles + resident weights/bias.
    tile_bytes = 2 * (tm * k * 2) + 2 * (tm * cout_p * 4) + k * cout_p * 2 + cout_p * 4
    vmem_limit = min(64 * 1024 * 1024, max(32 * 1024 * 1024, int(tile_bytes * 2)))

    out_col = pl.pallas_call(
        _conv_bn_hswish_kernel,
        out_shape=jax.ShapeDtypeStruct((m_pad, cout_p), jnp.float32),
        grid_spec=pltpu.PrefetchScalarGridSpec(
            num_scalar_prefetch=0,
            grid=grid,
            in_specs=[
                pl.BlockSpec((tm, k), lambda i: (i, 0)),
                pl.BlockSpec((k, cout_p), lambda i: (0, 0)),
                pl.BlockSpec((1, cout_p), lambda i: (0, 0)),
            ],
            out_specs=pl.BlockSpec((tm, cout_p), lambda i: (i, 0)),
        ),
        compiler_params=pltpu.CompilerParams(
            dimension_semantics=("parallel",),
            vmem_limit_bytes=vmem_limit),
    )(x_col, w_col, bias2d)

    # Drop padding, (N*OH*OW, Cout) -> NHWC -> NCHW
    out_nhwc = out_col[:m, :cout].reshape(n, oh, ow, cout)
    return jnp.transpose(out_nhwc, (0, 3, 1, 2))


# ---------------------------------------------------------------------------
# Reference (pure JAX, f32) for a sanity check
# ---------------------------------------------------------------------------
def _reference(x_nchw, conv_w, conv_b, bn_gamma, bn_beta, bn_mean, bn_var,
               *, stride=1, padding=1, eps=1e-5):
    y = jax.lax.conv_general_dilated(
        x_nchw.astype(jnp.float32), conv_w.astype(jnp.float32),
        window_strides=(stride, stride),
        padding=[(padding, padding), (padding, padding)],
        dimension_numbers=("NCHW", "OIHW", "NCHW"))
    y = y + conv_b.reshape(1, -1, 1, 1)
    y = (y - bn_mean.reshape(1, -1, 1, 1)) / jnp.sqrt(
        bn_var.reshape(1, -1, 1, 1) + eps)
    y = y * bn_gamma.reshape(1, -1, 1, 1) + bn_beta.reshape(1, -1, 1, 1)
    return y * jnp.clip(y + 3.0, 0.0, 6.0) / 6.0


if __name__ == "__main__":
    key = jax.random.PRNGKey(0)
    k_x, k_w, k_b, k_g, k_be, k_m, k_v = jax.random.split(key, 7)

    # Small shapes consistent with the module: in=4, out=8, k=3, stride=1, pad=1
    N, Cin, H, W = 2, 4, 16, 16
    Cout, KH, KW = 8, 3, 3

    x = jax.random.normal(k_x, (N, Cin, H, W), dtype=jnp.float32)
    conv_w = 0.1 * jax.random.normal(k_w, (Cout, Cin, KH, KW), dtype=jnp.float32)
    conv_b = 0.1 * jax.random.normal(k_b, (Cout,), dtype=jnp.float32)
    bn_gamma = 1.0 + 0.1 * jax.random.normal(k_g, (Cout,), dtype=jnp.float32)
    bn_beta = 0.1 * jax.random.normal(k_be, (Cout,), dtype=jnp.float32)
    bn_mean = 0.1 * jax.random.normal(k_m, (Cout,), dtype=jnp.float32)
    bn_var = jnp.abs(1.0 + 0.1 * jax.random.normal(k_v, (Cout,), dtype=jnp.float32))

    out = conv_bn_layer(x, conv_w, conv_b, bn_gamma, bn_beta, bn_mean, bn_var,
                        stride=1, padding=1)
    out = jax.block_until_ready(out)

    ref = _reference(x, conv_w, conv_b, bn_gamma, bn_beta, bn_mean, bn_var,
                     stride=1, padding=1)
    assert out.shape == (N, Cout, H, W)
    # bf16 matmul operands -> slightly looser tolerance than pure f32.
    assert jnp.allclose(out, ref, atol=2e-2, rtol=2e-2), float(
        jnp.max(jnp.abs(out - ref)))

    print("KERNEL_OK")
</pallas_src>

<mosaic_0001>
module attributes {stable_mosaic.version = 11 : i64} {
  func.func @_conv_bn_hswish_kernel(%arg0: i32, %arg1: memref<256x36xbf16, #tpu.memory_space<vmem>>, %arg2: memref<36x128xbf16, #tpu.memory_space<vmem>>, %arg3: memref<1x128xf32, #tpu.memory_space<vmem>>, %arg4: memref<256x128xf32, #tpu.memory_space<vmem>>) attributes {dimension_semantics = [#tpu.dimension_semantics<parallel>], iteration_bounds = array<i64: 2>, scalar_prefetch = 0 : i64, scratch_operands = 0 : i64, tpu.core_type = #tpu.core_type<tc>, window_params = [{transform_indices = @transform_0, window_bounds = array<i64: 256, 36>}, {pipeline_mode = #tpu.pipeline_mode<synchronous>, transform_indices = @transform_1, window_bounds = array<i64: 36, 128>}, {pipeline_mode = #tpu.pipeline_mode<synchronous>, transform_indices = @transform_2, window_bounds = array<i64: 1, 128>}, {transform_indices = @transform_3, window_bounds = array<i64: 256, 128>}]} {
    %c0 = arith.constant 0 : index
    %c0_0 = arith.constant 0 : index
    %0 = vector.load %arg1[%c0, %c0_0] : memref<256x36xbf16, #tpu.memory_space<vmem>>, vector<256x36xbf16>
    %c0_1 = arith.constant 0 : index
    %c0_2 = arith.constant 0 : index
    %1 = vector.load %arg2[%c0_1, %c0_2] : memref<36x128xbf16, #tpu.memory_space<vmem>>, vector<36x128xbf16>
    %cst = arith.constant dense<0.000000e+00> : vector<256x128xf32>
    %2 = tpu.matmul %0, %1, %cst {dimension_numbers = #tpu.dot_dimension_numbers<[1], [0], [0], [1], [0, 0, 1, 1], [], []>} : vector<256x36xbf16>, vector<36x128xbf16>, vector<256x128xf32> -> vector<256x128xf32>
    %c0_3 = arith.constant 0 : index
    %c0_4 = arith.constant 0 : index
    %3 = vector.load %arg3[%c0_3, %c0_4] : memref<1x128xf32, #tpu.memory_space<vmem>>, vector<1x128xf32>
    %4 = vector.broadcast %3 : vector<1x128xf32> to vector<256x128xf32>
    %5 = arith.addf %2, %4 : vector<256x128xf32>
    %cst_5 = arith.constant 3.000000e+00 : f32
    %6 = vector.broadcast %cst_5 : f32 to vector<256x128xf32>
    %7 = arith.addf %5, %6 : vector<256x128xf32>
    %cst_6 = arith.constant 0.000000e+00 : f32
    %cst_7 = arith.constant 6.000000e+00 : f32
    %8 = vector.broadcast %cst_6 : f32 to vector<256x128xf32>
    %9 = arith.maximumf %8, %7 : vector<256x128xf32>
    %10 = vector.broadcast %cst_7 : f32 to vector<256x128xf32>
    %11 = arith.minimumf %10, %9 : vector<256x128xf32>
    %12 = arith.mulf %5, %11 : vector<256x128xf32>
    %cst_8 = arith.constant 0.166666672 : f32
    %13 = vector.broadcast %cst_8 : f32 to vector<256x128xf32>
    %14 = arith.mulf %12, %13 : vector<256x128xf32>
    %c0_9 = arith.constant 0 : index
    %c0_10 = arith.constant 0 : index
    %15 = vector.load %arg4[%c0_9, %c0_10] : memref<256x128xf32, #tpu.memory_space<vmem>>, vector<256x128xf32>
    tpu.vector_store %arg4[%c0_9, %c0_10], %14 {strides = array<i32>} : memref<256x128xf32, #tpu.memory_space<vmem>>, vector<256x128xf32>,
    return
  }
  func.func @transform_0(%arg0: i32) -> (i32, i32) {
    %c0_i32 = arith.constant 0 : i32
    %c0_i32_0 = arith.constant 0 : i32
    return %arg0, %c0_i32 : i32, i32
  }
  func.func @transform_1(%arg0: i32) -> (i32, i32) {
    %c0_i32 = arith.constant 0 : i32
    %c0_i32_0 = arith.constant 0 : i32
    %c0_i32_1 = arith.constant 0 : i32
    return %c0_i32, %c0_i32_0 : i32, i32
  }
  func.func @transform_2(%arg0: i32) -> (i32, i32) {
    %c0_i32 = arith.constant 0 : i32
    %c0_i32_0 = arith.constant 0 : i32
    %c0_i32_1 = arith.constant 0 : i32
    return %c0_i32, %c0_i32_0 : i32, i32
  }
  func.func @transform_3(%arg0: i32) -> (i32, i32) {
    %c0_i32 = arith.constant 0 : i32
    %c0_i32_0 = arith.constant 0 : i32
    return %arg0, %c0_i32 : i32, i32
  }
}

</mosaic_0001>

<llo_original>
// kernel: conv_bn_layer.1
$region0: #{conv_bn_layer.1}
  #allocation0 [shape = 'u32[]', space=smem, size = 0x4, offset = 0x4, fixed_abs, tag = 'smem constant byte address 0x4 - core index']
  #allocation1 [shape = 'u32[72,128]{1,0:T(1,128)}', space=vmem, size = 0x9000, scoped, tag = 'internal scratch']
  %s0 = inlined_call_operand.vmem [shape: bf16[512,36], index: 0, kind: input, shape index: {}]
  %s1 = inlined_call_operand.vmem [shape: bf16[36,128], index: 1, kind: input, shape index: {}]
  %s2 = inlined_call_operand.vmem [shape: f32[1,128], index: 2, kind: input, shape index: {}]
  %s3 = inlined_call_operand.vmem [shape: f32[512,128], index: 3, kind: output, shape index: {}]
  %s4 = sld [smem:[#allocation0]]
  $region45: #{conv_bn_layer.1} parent=0
    _
  %s6 = ssub.s32 1, %s4
  %s7 = scalar_select 0, %s6, %s4
  loop: start=0, step=1, limit=4
  $region2: #{conv_bn_layer.1} parent=0 // loop_pre_header
    _
  $region3: #{conv_bn_layer.1} parent=0 // loop_header
    %s9 = sphi 0, %s13
    %p10 = scmp.ge.s32.totalorder %s9, 4
    %s19 = sphi 0, %s21
    %s22 = sphi 0, %s19
    %s23 = sphi 0, %s22
    %s39 = sphi 0, %s23
    %s43 = sphi 0, %s43
    %s45 = sphi 0, %s43
    %s46 = sphi 0, %s45
    %s60 = sphi 0, %s46
    %s64 = sphi 0, %s64
    %s66 = sphi 0, %s64
    %s67 = sphi 0, %s66
    %s81 = sphi 0, %s67
    %s87 = sphi 0, %s89
    %s90 = sphi 0, %s87
    %s91 = sphi 0, %s90
    %s107 = sphi 0, %s91
  $region4: #{conv_bn_layer.1} parent=0 // loop_header_branch
    %12 = sbr.rel (%p10) target = $region8
  $region5: #{conv_bn_layer.1} parent=0 // loop_body
    %s14 = ssub.s32 %s9, 1
    %s15 = ssub.s32 %s9, 2
    %s16 = sadd.s32 %s9, 1
    %s17 = ssub.s32 %s9, %s16
    %p18 = scmp.eq.s32.totalorder %s17, 0
    %s20 = sadd.s32 %s19, 1
    %s21 = scalar_select %p18, %s19, %s20
    %p24 = pneg %p18
    %p25 = scmp.eq.s32.totalorder %s9, 1
    %p26 = por %p24, %p25
    %p27 = scmp.ne.s32.totalorder %s19, %s22
    %p28 = scmp.eq.s32.totalorder %s9, 0
    %p29 = por %p27, %p28
    %p30 = scmp.ne.s32.totalorder %s19, %s22
    %p31 = scmp.eq.s32.totalorder %s14, 1
    %p32 = por %p30, %p31
    %p33 = scmp.ne.s32.totalorder %s22, %s23
    %p34 = scmp.eq.s32.totalorder %s14, 0
    %p35 = por %p33, %p34
    %p36 = scmp.ne.s32.totalorder %s22, %s23
    %p37 = scmp.eq.s32.totalorder %s15, 1
    %p38 = por %p36, %p37
    %p40 = scmp.ne.s32.totalorder %s23, %s39
    %p41 = scmp.eq.s32.totalorder %s15, 0
    %p42 = por %p40, %p41
    %s44 = sadd.s32 %s43, 1
    %p47 = scmp.eq.s32.totalorder %s9, 1
    %p48 = scmp.ne.s32.totalorder %s43, %s45
    %p49 = scmp.eq.s32.totalorder %s9, 0
    %p50 = por %p48, %p49
    %p51 = scmp.ne.s32.totalorder %s43, %s45
    %p52 = scmp.eq.s32.totalorder %s14, 1
    %p53 = por %p51, %p52
    %p54 = scmp.ne.s32.totalorder %s45, %s46
    %p55 = scmp.eq.s32.totalorder %s14, 0
    %p56 = por %p54, %p55
    %p57 = scmp.ne.s32.totalorder %s45, %s46
    %p58 = scmp.eq.s32.totalorder %s15, 1
    %p59 = por %p57, %p58
    %p61 = scmp.ne.s32.totalorder %s46, %s60
    %p62 = scmp.eq.s32.totalorder %s15, 0
    %p63 = por %p61, %p62
    %s65 = sadd.s32 %s64, 1
    %p68 = scmp.eq.s32.totalorder %s9, 1
    %p69 = scmp.ne.s32.totalorder %s64, %s66
    %p70 = scmp.eq.s32.totalorder %s9, 0
    %p71 = por %p69, %p70
    %p72 = scmp.ne.s32.totalorder %s64, %s66
    %p73 = scmp.eq.s32.totalorder %s14, 1
    %p74 = por %p72, %p73
    %p75 = scmp.ne.s32.totalorder %s66, %s67
    %p76 = scmp.eq.s32.totalorder %s14, 0
    %p77 = por %p75, %p76
    %p78 = scmp.ne.s32.totalorder %s66, %s67
    %p79 = scmp.eq.s32.totalorder %s15, 1
    %p80 = por %p78, %p79
    %p82 = scmp.ne.s32.totalorder %s67, %s81
    %p83 = scmp.eq.s32.totalorder %s15, 0
    %p84 = por %p82, %p83
    %s85 = ssub.s32 %s9, %s16
    %p86 = scmp.eq.s32.totalorder %s85, 0
    %s88 = sadd.s32 %s87, 1
    %s89 = scalar_select %p86, %s87, %s88
    %p92 = pneg %p86
    %p93 = scmp.eq.s32.totalorder %s9, 1
    %p94 = por %p92, %p93
    %p95 = scmp.ne.s32.totalorder %s87, %s90
    %p96 = scmp.eq.s32.totalorder %s9, 0
    %p97 = por %p95, %p96
    %p98 = scmp.ne.s32.totalorder %s87, %s90
    %p99 = scmp.eq.s32.totalorder %s14, 1
    %p100 = por %p98, %p99
    %p101 = scmp.ne.s32.totalorder %s90, %s91
    %p102 = scmp.eq.s32.totalorder %s14, 0
    %p103 = por %p101, %p102
    %p104 = scmp.ne.s32.totalorder %s90, %s91
    %p105 = scmp.eq.s32.totalorder %s15, 1
    %p106 = por %p104, %p105
    %p108 = scmp.ne.s32.totalorder %s91, %s107
    %p109 = scmp.eq.s32.totalorder %s15, 0
    %p110 = por %p108, %p109
    %p111 = scmp.le.s32.totalorder 1, %s9
    %p112 = scmp.lt.s32.totalorder %s9, 3
    %p113 = pnand %p111, %p112
    %p114 = pneg %p113
    // Predicated region
    $region9: #{conv_bn_layer.1} parent=5 // pred_check
      _
    $region10: #{conv_bn_layer.1} parent=5 // pred_check_branch
      %116 = sbr.rel (%p113) target = $region12
    $region11: #{conv_bn_layer.1} parent=5 // pred_region
      %s117 = ssub.s32 %s9, 1
      // Predicated region
      $region13: #{conv_bn_layer.1} parent=11 // pred_check
        %p118 = pneg %p56
      $region14: #{conv_bn_layer.1} parent=11 // pred_check_branch
        %120 = sbr.rel (%p118) target = $region16
      $region15: #{conv_bn_layer.1} parent=11 // pred_region
        _
      $region16: #{conv_bn_layer.1} parent=11 // pred_fallthru
        _
      // Predicated region
      $region17: #{conv_bn_layer.1} parent=11 // pred_check
        %p121 = pneg %p77
      $region18: #{conv_bn_layer.1} parent=11 // pred_check_branch
        %123 = sbr.rel (%p121) target = $region20
      $region19: #{conv_bn_layer.1} parent=11 // pred_region
        _
      $region20: #{conv_bn_layer.1} parent=11 // pred_fallthru
        _
    $region12: #{conv_bn_layer.1} parent=5 // pred_fallthru
      _
    %p124 = scmp.lt.s32.totalorder %s9, 2
    // Predicated region
    $region21: #{conv_bn_layer.1} parent=5 // pred_check
      %p125 = pneg %p124
    $region22: #{conv_bn_layer.1} parent=5 // pred_check_branch
      %127 = sbr.rel (%p125) target = $region24
    $region23: #{conv_bn_layer.1} parent=5 // pred_region
      // Predicated region
      $region25: #{conv_bn_layer.1} parent=23 // pred_check
        %p128 = pneg %p29
      $region26: #{conv_bn_layer.1} parent=23 // pred_check_branch
        %130 = sbr.rel (%p128) target = $region28
      $region27: #{conv_bn_layer.1} parent=23 // pred_region
        %s131 = smul.u32 32, %s9
        %p132 = scmp.lt.s32.totalorder %s131, 63
        %s133 = scalar_select %p132, %s131, 63
        %s134 = smul.addr %s133, 4
        %s135 = scalar_lea.vmem %s0, %s134
        %s136 = smul.u32 32, %s9
      $region28: #{conv_bn_layer.1} parent=23 // pred_fallthru
        _
    $region24: #{conv_bn_layer.1} parent=5 // pred_fallthru
      _
    %p137 = scmp.le.s32.totalorder 1, %s9
    %p138 = scmp.lt.s32.totalorder %s9, 3
    %p139 = pnand %p137, %p138
    %p140 = pneg %p139
    // Predicated region
    $region29: #{conv_bn_layer.1} parent=5 // pred_check
      _
    $region30: #{conv_bn_layer.1} parent=5 // pred_check_branch
      %142 = sbr.rel (%p139) target = $region32
    $region31: #{conv_bn_layer.1} parent=5 // pred_region
      %s143 = ssub.s32 %s9, 1
      %s144 = smul.u32 32, %s14
      %p145 = scmp.lt.s32.totalorder %s144, 63
      %s146 = scalar_select %p145, %s144, 63
      %s147 = smul.addr %s146, 4
      %s148 = scalar_lea.vmem %s0, %s147
      %p149 = pneg %p35
      %p150 = pneg %p32
      %p151 = pneg %p56
      %p152 = pneg %p53
      %p153 = pneg %p77
      %p154 = pneg %p74
      %p155 = pneg %p103
      %p156 = pneg %p100
      %s157 = smul.u32 32, %s14
      %p158 = scmp.lt.s32.totalorder %s157, 63
      %s159 = scalar_select %p158, %s157, 63
      %s160 = smul.addr %s159, 8
      %s161 = scalar_lea.vmem %s3, %s160
      %s162 = smul.u32 32, %s14
      %p163 = scmp.lt.s32.totalorder %s162, 63
      %s164 = scalar_select %p163, %s162, 63
      %s165 = smul.addr %s164, 4
      %s166 = scalar_lea.vmem %s0, %s165
      %s167 = smul.u32 32, %s14
      %s168 = smul.u32 32, %s14
      %p169 = scmp.lt.s32.totalorder %s168, 63
      %s170 = scalar_select %p169, %s168, 63
      %s171 = smul.addr %s170, 8
      %s172 = scalar_lea.vmem %s3, %s171
      %s173 = smul.u32 32, %s14
      %v175 = vld [vmem:[%s166] sm:$0xf]
      %v176 = vld [vmem:[%s166 + $0x4] sm:$0xf]
      %v177 = vld [vmem:[%s166 + $0x8] sm:$0xf]
      %v178 = vld [vmem:[%s166 + $0xc] sm:$0xf]
      %v179 = vld [vmem:[%s166 + $0x10] sm:$0xf]
      %v180 = vld [vmem:[%s166 + $0x14] sm:$0xf]
      %v181 = vld [vmem:[%s166 + $0x18] sm:$0xf]
      %v182 = vld [vmem:[%s166 + $0x1c] sm:$0xf]
      %v183 = vld [vmem:[%s166 + $0x20] sm:$0xf]
      %v184 = vld [vmem:[%s166 + $0x24] sm:$0xf]
      %v185 = vld [vmem:[%s166 + $0x28] sm:$0xf]
      %v186 = vld [vmem:[%s166 + $0x2c] sm:$0xf]
      %v187 = vld [vmem:[%s166 + $0x30] sm:$0xf]
      %v188 = vld [vmem:[%s166 + $0x34] sm:$0xf]
      %v189 = vld [vmem:[%s166 + $0x38] sm:$0xf]
      %v190 = vld [vmem:[%s166 + $0x3c] sm:$0xf]
      %v191 = vld [vmem:[%s166 + $0x40] sm:$0xf]
      %v192 = vld [vmem:[%s166 + $0x44] sm:$0xf]
      %v193 = vld [vmem:[%s166 + $0x48] sm:$0xf]
      %v194 = vld [vmem:[%s166 + $0x4c] sm:$0xf]
      %v195 = vld [vmem:[%s166 + $0x50] sm:$0xf]
      %v196 = vld [vmem:[%s166 + $0x54] sm:$0xf]
      %v197 = vld [vmem:[%s166 + $0x58] sm:$0xf]
      %v198 = vld [vmem:[%s166 + $0x5c] sm:$0xf]
      %v199 = vld [vmem:[%s166 + $0x60] sm:$0xf]
      %v200 = vld [vmem:[%s166 + $0x64] sm:$0xf]
      %v201 = vld [vmem:[%s166 + $0x68] sm:$0xf]
      %v202 = vld [vmem:[%s166 + $0x6c] sm:$0xf]
      %v203 = vld [vmem:[%s166 + $0x70] sm:$0xf]
      %v204 = vld [vmem:[%s166 + $0x74] sm:$0xf]
      %v205 = vld [vmem:[%s166 + $0x78] sm:$0xf]
      %v206 = vld [vmem:[%s166 + $0x7c] sm:$0xf]
      %v207 = vld [vmem:[%s1] sm:$0xf]
      %v208 = vld [vmem:[%s1 + $0x4] sm:$0xf]
      %v209 = vld [vmem:[%s1 + $0x8] sm:$0xf]
      %v210 = vld [vmem:[%s1 + $0xc] sm:$0xf]
      %v211 = vld [vmem:[%s1 + $0x10] sm:$0x3]
      %v212 = vld [vmem:[%s2] sm:$0x1]
      %v214 = vperm.slane %v212, 0
      %v248 = vunpack.c.l.b16 %v175
      %v249 = vunpack.c.l.b16 %v176
      %v250 = vunpack.c.l.b16 %v177
      %v251 = vunpack.c.l.b16 %v178
      %v252 = vunpack.c.l.b16 %v179
      %v253 = vunpack.c.l.b16 %v180
      %v254 = vunpack.c.l.b16 %v181
      %v255 = vunpack.c.l.b16 %v182
      %v256 = vunpack.c.l.b16 %v183
      %v257 = vunpack.c.l.b16 %v184
      %v258 = vunpack.c.l.b16 %v185
      %v259 = vunpack.c.l.b16 %v186
      %v260 = vunpack.c.l.b16 %v187
      %v261 = vunpack.c.l.b16 %v188
      %v262 = vunpack.c.l.b16 %v189
      %v263 = vunpack.c.l.b16 %v190
      %v264 = vunpack.c.l.b16 %v191
      %v265 = vunpack.c.l.b16 %v192
      %v266 = vunpack.c.l.b16 %v193
      %v267 = vunpack.c.l.b16 %v194
      %v268 = vunpack.c.l.b16 %v195
      %v269 = vunpack.c.l.b16 %v196
      %v270 = vunpack.c.l.b16 %v197
      %v271 = vunpack.c.l.b16 %v198
      %v272 = vunpack.c.l.b16 %v199
      %v273 = vunpack.c.l.b16 %v200
      %v274 = vunpack.c.l.b16 %v201
      %v275 = vunpack.c.l.b16 %v202
      %v276 = vunpack.c.l.b16 %v203
      %v277 = vunpack.c.l.b16 %v204
      %v278 = vunpack.c.l.b16 %v205
      %v279 = vunpack.c.l.b16 %v206
      %v280 = vpack.c.b16 %v249, %v248
      %v281 = vpack.c.b16 %v251, %v250
      %v282 = vpack.c.b16 %v253, %v252
      %v283 = vpack.c.b16 %v255, %v254
      %v284 = vpack.c.b16 %v257, %v256
      %v285 = vpack.c.b16 %v259, %v258
      %v286 = vpack.c.b16 %v261, %v260
      %v287 = vpack.c.b16 %v263, %v262
      %v288 = vpack.c.b16 %v265, %v264
      %v289 = vpack.c.b16 %v267, %v266
      %v290 = vpack.c.b16 %v269, %v268
      %v291 = vpack.c.b16 %v271, %v270
      %v292 = vpack.c.b16 %v273, %v272
      %v293 = vpack.c.b16 %v275, %v274
      %v294 = vpack.c.b16 %v277, %v276
      %v295 = vpack.c.b16 %v279, %v278
      %v301 = vunpack.c.l.b16 %v207
      %v302 = vunpack.c.l.b16 %v208
      %v303 = vunpack.c.l.b16 %v209
      %v304 = vunpack.c.l.b16 %v210
      %v305 = vunpack.c.l.b16 %v211
      %v306 = vpack.c.b16 %v302, %v301
      %v307 = vpack.c.b16 %v304, %v303
      %v308 = vpack.c.b16 %v305, %v305
      %vm311 = vcmask 293888
      %v313 = vsel %vm311, %v280, 0
      %v316 = vsel %vm311, %v281, 0
      %v319 = vsel %vm311, %v282, 0
      %v322 = vsel %vm311, %v283, 0
      %v325 = vsel %vm311, %v284, 0
      %v328 = vsel %vm311, %v285, 0
      %v331 = vsel %vm311, %v286, 0
      %v334 = vsel %vm311, %v287, 0
      %v337 = vsel %vm311, %v288, 0
      %v340 = vsel %vm311, %v289, 0
      %v343 = vsel %vm311, %v290, 0
      %v346 = vsel %vm311, %v291, 0
      %v349 = vsel %vm311, %v292, 0
      %v352 = vsel %vm311, %v293, 0
      %v355 = vsel %vm311, %v294, 0
      %v358 = vsel %vm311, %v295, 0
      %vm360 = vcmask 1041408
      %v362 = vsel %vm360, %v308, 0
      %364 = vmatpush.bf16.msra.mxu0 0
      %365 = vmatpush.bf16.msra.mxu0 0
      %366 = vmatpush.bf16.msra.mxu0 0
      %367 = vmatpush.bf16.msra.mxu0 0
      %368 = vmatpush.bf16.msra.mxu0 0
      %369 = vmatpush.bf16.msra.mxu0 %v362
      %370 = vmatpush.bf16.msra.mxu0 %v307
      %371 = vmatpush.bf16.msra.mxu0 %v306
      %372 = vmatmul.bf16.gmra.mxu0 %v313
      %v373 = vpop.f32.mrf.mxu0
      %v374 = vadd.f32 %v214, %v373
      %v375 = vpop.f32.mrf.mxu0
      %v376 = vadd.f32 %v214, %v375
      %377 = vmatmul.bf16.gmra.mxu0 %v316
      %v378 = vpop.f32.mrf.mxu0
      %v379 = vadd.f32 %v214, %v378
      %v380 = vpop.f32.mrf.mxu0
      %v381 = vadd.f32 %v214, %v380
      %382 = vmatmul.bf16.gmra.mxu0 %v319
      %v383 = vpop.f32.mrf.mxu0
      %v384 = vadd.f32 %v214, %v383
      %v385 = vpop.f32.mrf.mxu0
      %v386 = vadd.f32 %v214, %v385
      %387 = vmatmul.bf16.gmra.mxu0 %v322
      %v388 = vpop.f32.mrf.mxu0
      %v389 = vadd.f32 %v214, %v388
      %v390 = vpop.f32.mrf.mxu0
      %v391 = vadd.f32 %v214, %v390
      %392 = vmatmul.bf16.gmra.mxu0 %v325
      %v393 = vpop.f32.mrf.mxu0
      %v394 = vadd.f32 %v214, %v393
      %v395 = vpop.f32.mrf.mxu0
      %v396 = vadd.f32 %v214, %v395
      %397 = vmatmul.bf16.gmra.mxu0 %v328
      %v398 = vpop.f32.mrf.mxu0
      %v399 = vadd.f32 %v214, %v398
      %v400 = vpop.f32.mrf.mxu0
      %v401 = vadd.f32 %v214, %v400
      %402 = vmatmul.bf16.gmra.mxu0 %v331
      %v403 = vpop.f32.mrf.mxu0
      %v404 = vadd.f32 %v214, %v403
      %v405 = vpop.f32.mrf.mxu0
      %v406 = vadd.f32 %v214, %v405
      %407 = vmatmul.bf16.gmra.mxu0 %v334
      %v408 = vpop.f32.mrf.mxu0
      %v409 = vadd.f32 %v214, %v408
      %v410 = vpop.f32.mrf.mxu0
      %v411 = vadd.f32 %v214, %v410
      %412 = vmatmul.bf16.gmra.mxu0 %v337
      %v413 = vpop.f32.mrf.mxu0
      %v414 = vadd.f32 %v214, %v413
      %v415 = vpop.f32.mrf.mxu0
      %v416 = vadd.f32 %v214, %v415
      %417 = vmatmul.bf16.gmra.mxu0 %v340
      %v418 = vpop.f32.mrf.mxu0
      %v419 = vadd.f32 %v214, %v418
      %v420 = vpop.f32.mrf.mxu0
      %v421 = vadd.f32 %v214, %v420
      %422 = vmatmul.bf16.gmra.mxu0 %v343
      %v423 = vpop.f32.mrf.mxu0
      %v424 = vadd.f32 %v214, %v423
      %v425 = vpop.f32.mrf.mxu0
      %v426 = vadd.f32 %v214, %v425
      %427 = vmatmul.bf16.gmra.mxu0 %v346
      %v428 = vpop.f32.mrf.mxu0
      %v429 = vadd.f32 %v214, %v428
      %v430 = vpop.f32.mrf.mxu0
      %v431 = vadd.f32 %v214, %v430
      %432 = vmatmul.bf16.gmra.mxu0 %v349
      %v433 = vpop.f32.mrf.mxu0
      %v434 = vadd.f32 %v214, %v433
      %v435 = vpop.f32.mrf.mxu0
      %v436 = vadd.f32 %v214, %v435
      %437 = vmatmul.bf16.gmra.mxu0 %v352
      %v438 = vpop.f32.mrf.mxu0
      %v439 = vadd.f32 %v214, %v438
      %v440 = vpop.f32.mrf.mxu0
      %v441 = vadd.f32 %v214, %v440
      %442 = vmatmul.bf16.gmra.mxu0 %v355
      %v443 = vpop.f32.mrf.mxu0
      %v444 = vadd.f32 %v214, %v443
      %v445 = vpop.f32.mrf.mxu0
      %v446 = vadd.f32 %v214, %v445
      %447 = vmatmul.bf16.gmra.mxu0 %v358
      %v448 = vpop.f32.mrf.mxu0
      %v449 = vadd.f32 %v214, %v448
      %v450 = vpop.f32.mrf.mxu0
      %v451 = vadd.f32 %v214, %v450
      %452 = vdwg.mxu0
      %v453 = vadd.f32 %v374, 3.0
      %v454 = vadd.f32 %v376, 3.0
      %v455 = vadd.f32 %v379, 3.0
      %v456 = vadd.f32 %v381, 3.0
      %v457 = vadd.f32 %v384, 3.0
      %v458 = vadd.f32 %v386, 3.0
      %v459 = vadd.f32 %v389, 3.0
      %v460 = vadd.f32 %v391, 3.0
      %v461 = vadd.f32 %v394, 3.0
      %v462 = vadd.f32 %v396, 3.0
      %v463 = vadd.f32 %v399, 3.0
      %v464 = vadd.f32 %v401, 3.0
      %v465 = vadd.f32 %v404, 3.0
      %v466 = vadd.f32 %v406, 3.0
      %v467 = vadd.f32 %v409, 3.0
      %v468 = vadd.f32 %v411, 3.0
      %v469 = vadd.f32 %v414, 3.0
      %v470 = vadd.f32 %v416, 3.0
      %v471 = vadd.f32 %v419, 3.0
      %v472 = vadd.f32 %v421, 3.0
      %v473 = vadd.f32 %v424, 3.0
      %v474 = vadd.f32 %v426, 3.0
      %v475 = vadd.f32 %v429, 3.0
      %v476 = vadd.f32 %v431, 3.0
      %v477 = vadd.f32 %v434, 3.0
      %v478 = vadd.f32 %v436, 3.0
      %v479 = vadd.f32 %v439, 3.0
      %v480 = vadd.f32 %v441, 3.0
      %v481 = vadd.f32 %v444, 3.0
      %v482 = vadd.f32 %v446, 3.0
      %v483 = vadd.f32 %v449, 3.0
      %v484 = vadd.f32 %v451, 3.0
      %v485 = vmax.f32 %v453, 0.0
      %v486 = vmax.f32 %v454, 0.0
      %v487 = vmax.f32 %v455, 0.0
      %v488 = vmax.f32 %v456, 0.0
      %v489 = vmax.f32 %v457, 0.0
      %v490 = vmax.f32 %v458, 0.0
      %v491 = vmax.f32 %v459, 0.0
      %v492 = vmax.f32 %v460, 0.0
      %v493 = vmax.f32 %v461, 0.0
      %v494 = vmax.f32 %v462, 0.0
      %v495 = vmax.f32 %v463, 0.0
      %v496 = vmax.f32 %v464, 0.0
      %v497 = vmax.f32 %v465, 0.0
      %v498 = vmax.f32 %v466, 0.0
      %v499 = vmax.f32 %v467, 0.0
      %v500 = vmax.f32 %v468, 0.0
      %v501 = vmax.f32 %v469, 0.0
      %v502 = vmax.f32 %v470, 0.0
      %v503 = vmax.f32 %v471, 0.0
      %v504 = vmax.f32 %v472, 0.0
      %v505 = vmax.f32 %v473, 0.0
      %v506 = vmax.f32 %v474, 0.0
      %v507 = vmax.f32 %v475, 0.0
      %v508 = vmax.f32 %v476, 0.0
      %v509 = vmax.f32 %v477, 0.0
      %v510 = vmax.f32 %v478, 0.0
      %v511 = vmax.f32 %v479, 0.0
      %v512 = vmax.f32 %v480, 0.0
      %v513 = vmax.f32 %v481, 0.0
      %v514 = vmax.f32 %v482, 0.0
      %v515 = vmax.f32 %v483, 0.0
      %v516 = vmax.f32 %v484, 0.0
      %v517 = vmin.f32 %v485, 6.0
      %v518 = vmin.f32 %v486, 6.0
      %v519 = vmin.f32 %v487, 6.0
      %v520 = vmin.f32 %v488, 6.0
      %v521 = vmin.f32 %v489, 6.0
      %v522 = vmin.f32 %v490, 6.0
      %v523 = vmin.f32 %v491, 6.0
      %v524 = vmin.f32 %v492, 6.0
      %v525 = vmin.f32 %v493, 6.0
      %v526 = vmin.f32 %v494, 6.0
      %v527 = vmin.f32 %v495, 6.0
      %v528 = vmin.f32 %v496, 6.0
      %v529 = vmin.f32 %v497, 6.0
      %v530 = vmin.f32 %v498, 6.0
      %v531 = vmin.f32 %v499, 6.0
      %v532 = vmin.f32 %v500, 6.0
      %v533 = vmin.f32 %v501, 6.0
      %v534 = vmin.f32 %v502, 6.0
      %v535 = vmin.f32 %v503, 6.0
      %v536 = vmin.f32 %v504, 6.0
      %v537 = vmin.f32 %v505, 6.0
      %v538 = vmin.f32 %v506, 6.0
      %v539 = vmin.f32 %v507, 6.0
      %v540 = vmin.f32 %v508, 6.0
      %v541 = vmin.f32 %v509, 6.0
      %v542 = vmin.f32 %v510, 6.0
      %v543 = vmin.f32 %v511, 6.0
      %v544 = vmin.f32 %v512, 6.0
      %v545 = vmin.f32 %v513, 6.0
      %v546 = vmin.f32 %v514, 6.0
      %v547 = vmin.f32 %v515, 6.0
      %v548 = vmin.f32 %v516, 6.0
      %v549 = vmul.f32 %v374, %v517
      %v550 = vmul.f32 %v376, %v518
      %v551 = vmul.f32 %v379, %v519
      %v552 = vmul.f32 %v381, %v520
      %v553 = vmul.f32 %v384, %v521
      %v554 = vmul.f32 %v386, %v522
      %v555 = vmul.f32 %v389, %v523
      %v556 = vmul.f32 %v391, %v524
      %v557 = vmul.f32 %v394, %v525
      %v558 = vmul.f32 %v396, %v526
      %v559 = vmul.f32 %v399, %v527
      %v560 = vmul.f32 %v401, %v528
      %v561 = vmul.f32 %v404, %v529
      %v562 = vmul.f32 %v406, %v530
      %v563 = vmul.f32 %v409, %v531
      %v564 = vmul.f32 %v411, %v532
      %v565 = vmul.f32 %v414, %v533
      %v566 = vmul.f32 %v416, %v534
      %v567 = vmul.f32 %v419, %v535
      %v568 = vmul.f32 %v421, %v536
      %v569 = vmul.f32 %v424, %v537
      %v570 = vmul.f32 %v426, %v538
      %v571 = vmul.f32 %v429, %v539
      %v572 = vmul.f32 %v431, %v540
      %v573 = vmul.f32 %v434, %v541
      %v574 = vmul.f32 %v436, %v542
      %v575 = vmul.f32 %v439, %v543
      %v576 = vmul.f32 %v441, %v544
      %v577 = vmul.f32 %v444, %v545
      %v578 = vmul.f32 %v446, %v546
      %v579 = vmul.f32 %v449, %v547
      %v580 = vmul.f32 %v451, %v548
      %v581 = vmul.f32 %v549, 0.16666667
      %v582 = vmul.f32 %v550, 0.16666667
      %v583 = vmul.f32 %v551, 0.16666667
      %v584 = vmul.f32 %v552, 0.16666667
      %v585 = vmul.f32 %v553, 0.16666667
      %v586 = vmul.f32 %v554, 0.16666667
      %v587 = vmul.f32 %v555, 0.16666667
      %v588 = vmul.f32 %v556, 0.16666667
      %v589 = vmul.f32 %v557, 0.16666667
      %v590 = vmul.f32 %v558, 0.16666667
      %v591 = vmul.f32 %v559, 0.16666667
      %v592 = vmul.f32 %v560, 0.16666667
      %v593 = vmul.f32 %v561, 0.16666667
      %v594 = vmul.f32 %v562, 0.16666667
      %v595 = vmul.f32 %v563, 0.16666667
      %v596 = vmul.f32 %v564, 0.16666667
      %v597 = vmul.f32 %v565, 0.16666667
      %v598 = vmul.f32 %v566, 0.16666667
      %v599 = vmul.f32 %v567, 0.16666667
      %v600 = vmul.f32 %v568, 0.16666667
      %v601 = vmul.f32 %v569, 0.16666667
      %v602 = vmul.f32 %v570, 0.16666667
      %v603 = vmul.f32 %v571, 0.16666667
      %v604 = vmul.f32 %v572, 0.16666667
      %v605 = vmul.f32 %v573, 0.16666667
      %v606 = vmul.f32 %v574, 0.16666667
      %v607 = vmul.f32 %v575, 0.16666667
      %v608 = vmul.f32 %v576, 0.16666667
      %v609 = vmul.f32 %v577, 0.16666667
      %v610 = vmul.f32 %v578, 0.16666667
      %v611 = vmul.f32 %v579, 0.16666667
      %v612 = vmul.f32 %v580, 0.16666667
      %613 = vst [vmem:[%s172] sm:$0xff] %v581
      %614 = vst [vmem:[%s172 + $0x8] sm:$0xff] %v582
      %615 = vst [vmem:[%s172 + $0x10] sm:$0xff] %v583
      %616 = vst [vmem:[%s172 + $0x18] sm:$0xff] %v584
      %617 = vst [vmem:[%s172 + $0x20] sm:$0xff] %v585
      %618 = vst [vmem:[%s172 + $0x28] sm:$0xff] %v586
      %619 = vst [vmem:[%s172 + $0x30] sm:$0xff] %v587
      %620 = vst [vmem:[%s172 + $0x38] sm:$0xff] %v588
      %621 = vst [vmem:[%s172 + $0x40] sm:$0xff] %v589
      %622 = vst [vmem:[%s172 + $0x48] sm:$0xff] %v590
      %623 = vst [vmem:[%s172 + $0x50] sm:$0xff] %v591
      %624 = vst [vmem:[%s172 + $0x58] sm:$0xff] %v592
      %625 = vst [vmem:[%s172 + $0x60] sm:$0xff] %v593
      %626 = vst [vmem:[%s172 + $0x68] sm:$0xff] %v594
      %627 = vst [vmem:[%s172 + $0x70] sm:$0xff] %v595
      %628 = vst [vmem:[%s172 + $0x78] sm:$0xff] %v596
      %629 = vst [vmem:[%s172 + $0x80] sm:$0xff] %v597
      %630 = vst [vmem:[%s172 + $0x88] sm:$0xff] %v598
      %631 = vst [vmem:[%s172 + $0x90] sm:$0xff] %v599
      %632 = vst [vmem:[%s172 + $0x98] sm:$0xff] %v600
      %633 = vst [vmem:[%s172 + $0xa0] sm:$0xff] %v601
      %634 = vst [vmem:[%s172 + $0xa8] sm:$0xff] %v602
      %635 = vst [vmem:[%s172 + $0xb0] sm:$0xff] %v603
      %636 = vst [vmem:[%s172 + $0xb8] sm:$0xff] %v604
      %637 = vst [vmem:[%s172 + $0xc0] sm:$0xff] %v605
      %638 = vst [vmem:[%s172 + $0xc8] sm:$0xff] %v606
      %639 = vst [vmem:[%s172 + $0xd0] sm:$0xff] %v607
      %640 = vst [vmem:[%s172 + $0xd8] sm:$0xff] %v608
      %641 = vst [vmem:[%s172 + $0xe0] sm:$0xff] %v609
      %642 = vst [vmem:[%s172 + $0xe8] sm:$0xff] %v610
      %643 = vst [vmem:[%s172 + $0xf0] sm:$0xff] %v611
      %644 = vst [vmem:[%s172 + $0xf8] sm:$0xff] %v612
      %s645 = smul.u32 32, %s14
      %p646 = scmp.lt.s32.totalorder %s645, 63
      %s647 = scalar_select %p646, %s645, 63
      %s648 = smul.addr %s647, 8
      %s649 = scalar_lea.vmem %s3, %s648
      // Predicated region
      $region33: #{conv_bn_layer.1} parent=31 // pred_check
        %p650 = pneg %p100
      $region34: #{conv_bn_layer.1} parent=31 // pred_check_branch
        %652 = sbr.rel (%p650) target = $region36
      $region35: #{conv_bn_layer.1} parent=31 // pred_region
        %s653 = smul.u32 32, %s14
      $region36: #{conv_bn_layer.1} parent=31 // pred_fallthru
        _
    $region32: #{conv_bn_layer.1} parent=5 // pred_fallthru
      _
    %p654 = scmp.le.s32.totalorder 2, %s9
    // Predicated region
    $region37: #{conv_bn_layer.1} parent=5 // pred_check
      %p655 = pneg %p654
    $region38: #{conv_bn_layer.1} parent=5 // pred_check_branch
      %657 = sbr.rel (%p655) target = $region40
    $region39: #{conv_bn_layer.1} parent=5 // pred_region
      %s658 = ssub.s32 %s9, 2
      // Predicated region
      $region41: #{conv_bn_layer.1} parent=39 // pred_check
        %p659 = pneg %p106
      $region42: #{conv_bn_layer.1} parent=39 // pred_check_branch
        %661 = sbr.rel (%p659) target = $region44
      $region43: #{conv_bn_layer.1} parent=39 // pred_region
        %s662 = smul.u32 32, %s15
        %p663 = scmp.lt.s32.totalorder %s662, 63
        %s664 = scalar_select %p663, %s662, 63
        %s665 = smul.addr %s664, 8
        %s666 = scalar_lea.vmem %s3, %s665
      $region44: #{conv_bn_layer.1} parent=39 // pred_fallthru
        _
    $region40: #{conv_bn_layer.1} parent=5 // pred_fallthru
      _
  $region6: #{conv_bn_layer.1} parent=0 // loop_footer
    %s13 = sadd.s32 1, %s9
  $region7: #{conv_bn_layer.1} parent=0 // loop_footer_branch
    %8 = sbr.rel target = $region3
  $region8: #{conv_bn_layer.1} parent=0 // loop_exit
    _

</llo_original>
